<compile_context>
chip_gen: v6e
topology: v6e:2x2x1
jax: 0.10.0
libtpu: 0.0.40
codegen_flags: <defaults>
</compile_context>

<pallas_src>
import numpy as np
import jax
import jax.numpy as jnp
from jax.experimental import pallas as pl
from jax.experimental.pallas import tpu as pltpu


# ---------------------------------------------------------------------------
# Pallas kernels:  y[m, n] = sum_k x[m, k] * w_t[k, n] + bias[n]
# (w_t already holds base_weight + block-sparse delta, pre-transposed to (K, N))
# ---------------------------------------------------------------------------

def _gemm_bias_kernel_f32out(x_ref, w_ref, b_ref, o_ref):
    """float32 output: accumulate directly into the resident output block."""
    k = pl.program_id(2)  # reduction (K) axis — last in the grid

    @pl.when(k == 0)
    def _():
        o_ref[...] = jnp.broadcast_to(b_ref[...], o_ref.shape)

    o_ref[...] += jnp.dot(x_ref[...], w_ref[...],
                          preferred_element_type=jnp.float32)


def _gemm_bias_kernel_scratch(x_ref, w_ref, b_ref, o_ref, acc_ref):
    """Generic output dtype: f32 VMEM accumulator, cast on the last K step."""
    k = pl.program_id(2)

    @pl.when(k == 0)
    def _():
        acc_ref[...] = jnp.zeros_like(acc_ref)

    acc_ref[...] += jnp.dot(x_ref[...], w_ref[...],
                            preferred_element_type=jnp.float32)

    @pl.when(k == pl.num_programs(2) - 1)
    def _():
        o_ref[...] = (acc_ref[...] + b_ref[...]).astype(o_ref.dtype)


def _pick_tile(dim, candidates):
    for c in candidates:
        if c <= dim and dim % c == 0:
            return c
    return dim  # fall back to the full extent (always a legal block size)


def fused_linear_pallas(x2d, w_t, bias_f32, out_dtype, *, tm_cap=256,
                        tn_candidates=(512, 256, 128),
                        tk_candidates=(512, 256, 128)):
    """y = x2d @ w_t + bias  with x2d:(M,K), w_t:(K,N), bias_f32:(1,N)."""
    M, K = x2d.shape
    K2, N = w_t.shape
    assert K == K2

    tn = _pick_tile(N, tn_candidates)
    tk = _pick_tile(K, tk_candidates)

    # Keep M fully resident when small; cap + pad otherwise so the x block and
    # the resident output block stay within VMEM budget (v7x: 64 MiB total).
    if M <= tm_cap:
        tm, x_p = M, x2d
    else:
        tm = tm_cap
        pad = (-M) % tm
        x_p = jnp.pad(x2d, ((0, pad), (0, 0))) if pad else x2d
    Mp = x_p.shape[0]

    grid = (Mp // tm, N // tn, K // tk)   # reduction axis last
    out_is_f32 = np.dtype(out_dtype) == np.dtype(jnp.float32)
    kernel = _gemm_bias_kernel_f32out if out_is_f32 else _gemm_bias_kernel_scratch
    scratch = [] if out_is_f32 else [pltpu.VMEM((tm, tn), jnp.float32)]

    y = pl.pallas_call(
        kernel,
        out_shape=jax.ShapeDtypeStruct((Mp, N), out_dtype),
        grid_spec=pltpu.PrefetchScalarGridSpec(
            num_scalar_prefetch=0,
            grid=grid,
            in_specs=[
                # NOTE: x tiles are re-fetched once per N tile (index map ignores
                # j) — negligible at small M; revisit ordering for prefill-sized M.
                pl.BlockSpec((tm, tk), lambda i, j, k: (i, k)),   # activations
                pl.BlockSpec((tk, tn), lambda i, j, k: (k, j)),   # folded weight (K, N)
                pl.BlockSpec((1, tn), lambda i, j, k: (0, j)),    # bias (f32)
            ],
            out_specs=pl.BlockSpec((tm, tn), lambda i, j, k: (i, j)),
            scratch_shapes=scratch,
        ),
        compiler_params=pltpu.CompilerParams(
            dimension_semantics=("parallel", "parallel", "arbitrary"),
            vmem_limit_bytes=32 * 1024 * 1024,
        ),
    )(x_p, w_t, bias_f32)
    return y[:M] if Mp != M else y


# ---------------------------------------------------------------------------
# Block-granular reconstruction of the dense delta from CSR-ordered values.
# ---------------------------------------------------------------------------

def build_block_scatter_metadata(idxs_np, weight_shape, block_size):
    """Host-side (static) metadata derived from the module's CSR-ordered 2-D
    index buffer: which (block_row, block_col) blocks are kept, per block-row."""
    rows = np.asarray(idxs_np[0])
    cols = np.asarray(idxs_np[1])
    out_features, in_features = weight_shape
    bs = block_size
    nbr, nbc = out_features // bs, in_features // bs
    brow, bcol = rows // bs, cols // bs

    blocks_per_row, block_rows, block_cols = [], [], []
    for r in range(nbr):
        cset = np.unique(bcol[brow == r])          # ascending == CSR data order
        blocks_per_row.append(int(cset.size))
        block_rows.append(np.full(cset.size, r, dtype=np.int32))
        block_cols.append(cset.astype(np.int32))
    return dict(
        bs=bs, nbr=nbr, nbc=nbc,
        blocks_per_row=tuple(blocks_per_row),
        block_rows=np.concatenate(block_rows),
        block_cols=np.concatenate(block_cols),
    )


def _dense_delta_from_csr_values(values_flat, meta, dtype):
    """Rebuild the dense (out, in) delta using only reshapes/transposes plus a
    single block-granular scatter (n_blocks indices instead of nnz indices)."""
    bs, nbr, nbc = meta["bs"], meta["nbr"], meta["nbc"]
    blocks, off = [], 0
    for k_r in meta["blocks_per_row"]:
        if k_r == 0:
            continue
        seg = values_flat[off: off + bs * k_r * bs]
        # Within one block-row the CSR data is laid out (dense_row, block, col).
        blocks.append(seg.reshape(bs, k_r, bs).transpose(1, 0, 2))
        off += bs * k_r * bs
    blocks = jnp.concatenate(blocks, axis=0).astype(dtype)      # (n_kept, bs, bs)
    delta = jnp.zeros((nbr, nbc, bs, bs), dtype=dtype)
    delta = delta.at[meta["block_rows"], meta["block_cols"]].set(blocks)
    return delta.transpose(0, 2, 1, 3).reshape(nbr * bs, nbc * bs)


# ---------------------------------------------------------------------------
# Forward
# ---------------------------------------------------------------------------

def block_sparse_linear_scatter_forward(x, base_weight, base_bias,
                                        sparse_values_flat, scatter_meta, *,
                                        compute_dtype=jnp.bfloat16):
    """Forward of BlockSparseLinearModuleScatter.

    x:                  (..., in_features)
    base_weight:        (out_features, in_features)  frozen dense weight
    base_bias:          (out_features,)
    sparse_values_flat: (nnz,) CSR-data-ordered block-sparse values
    scatter_meta:       static metadata from build_block_scatter_metadata(idxs)
    """
    out_dtype = x.dtype

    # TODO(synk): the CSR->dense delta reconstruction and the one-time
    # W_eff = W + delta fold are irregular setup with no clean rectangular-tile
    # Pallas form; they run as plain (jit-fused) XLA glue before the kernel.
    delta = _dense_delta_from_csr_values(sparse_values_flat, scatter_meta,
                                         base_weight.dtype)
    w_eff_t = (base_weight + delta).T                 # (in, out): lane dim = out

    if compute_dtype is not None:
        w_eff_t = w_eff_t.astype(compute_dtype)
        x = x.astype(compute_dtype)
    bias_f32 = base_bias.reshape(1, -1).astype(jnp.float32)

    lead = x.shape[:-1]
    x2d = x.reshape(-1, x.shape[-1])
    y2d = fused_linear_pallas(x2d, w_eff_t, bias_f32, out_dtype)
    return y2d.reshape(*lead, base_weight.shape[0])


# ---------------------------------------------------------------------------
# Demo / self-check
# ---------------------------------------------------------------------------

def _build_block_sparse_structure(key, out_features, in_features, block_size,
                                  keep_ratio):
    """Deterministically pick kept blocks; return (2, nnz) CSR-ordered indices
    (mirrors SparseWeights._init_sparse_weights + twoD_indices)."""
    nbr = out_features // block_size
    nbc = in_features // block_size
    n_blocks = nbr * nbc
    n_keep = max(1, int(round(keep_ratio * n_blocks)))
    kept = np.asarray(jax.random.permutation(key, n_blocks)[:n_keep])

    layout = np.zeros((nbr, nbc), dtype=bool)
    layout[kept // nbc, kept % nbc] = True
    dense_mask = np.kron(layout, np.ones((block_size, block_size), dtype=bool))
    rows, cols = np.nonzero(dense_mask)               # row-major == CSR order
    return np.stack([rows, cols]).astype(np.int32), n_keep


if __name__ == "__main__":
    batch, seq = 2, 8
    in_features, out_features = 256, 256
    block_size = 16
    keep_ratio = 0.25

    key = jax.random.PRNGKey(0)
    k_w, k_b, k_x, k_s, k_blk = jax.random.split(key, 5)

    base_weight = jax.random.normal(k_w, (out_features, in_features),
                                    dtype=jnp.float32) * 0.02
    base_bias = jax.random.normal(k_b, (out_features,), dtype=jnp.float32) * 0.01
    x = jax.random.normal(k_x, (batch, seq, in_features), dtype=jnp.float32)

    # Block-sparse structure + CSR-ordered 2-D indices (module buffers).
    idxs_np, n_blocks_kept = _build_block_sparse_structure(
        k_blk, out_features, in_features, block_size, keep_ratio)
    nnz = idxs_np.shape[1]

    # sparse_weights parameter: (n_blocks, block_size, block_size) view of the
    # flat CSR data; non-zero init to exercise the scatter path.
    sparse_weights = jax.random.normal(
        k_s, (n_blocks_kept, block_size, block_size), dtype=jnp.float32) * 0.05
    sparse_values_flat = sparse_weights.reshape(-1)
    assert sparse_values_flat.shape[0] == nnz

    scatter_meta = build_block_scatter_metadata(
        idxs_np, base_weight.shape, block_size)

    fwd = jax.jit(lambda x_, w_, b_, v_: block_sparse_linear_scatter_forward(
        x_, w_, b_, v_, scatter_meta))
    y = jax.block_until_ready(fwd(x, base_weight, base_bias, sparse_values_flat))

    # Pure-JAX reference of the exact PyTorch semantics (f32, elementwise scatter).
    w_eff_ref = base_weight.at[idxs_np[0], idxs_np[1]].add(sparse_values_flat)
    y_ref = jnp.dot(x.reshape(-1, in_features), w_eff_ref.T,
                    precision=jax.lax.Precision.HIGHEST) + base_bias
    y_ref = y_ref.reshape(batch, seq, out_features)

    # bf16 streamed operands + f32 accumulation -> loose-but-safe tolerance.
    np.testing.assert_allclose(np.asarray(y), np.asarray(y_ref),
                               rtol=3e-2, atol=3e-2)

    print("KERNEL_OK")
</pallas_src>

<mosaic_0001>
module attributes {stable_mosaic.version = 11 : i64} {
  func.func @_gemm_bias_kernel_f32out(%arg0: i32, %arg1: i32, %arg2: i32, %arg3: memref<16x256xbf16, #tpu.memory_space<vmem>>, %arg4: memref<256x256xbf16, #tpu.memory_space<vmem>>, %arg5: memref<1x256xf32, #tpu.memory_space<vmem>>, %arg6: memref<16x256xf32, #tpu.memory_space<vmem>>) attributes {dimension_semantics = [#tpu.dimension_semantics<parallel>, #tpu.dimension_semantics<parallel>, #tpu.dimension_semantics<arbitrary>], iteration_bounds = array<i64: 1, 1, 1>, scalar_prefetch = 0 : i64, scratch_operands = 0 : i64, tpu.core_type = #tpu.core_type<tc>, window_params = [{transform_indices = @transform_0, window_bounds = array<i64: 16, 256>}, {transform_indices = @transform_1, window_bounds = array<i64: 256, 256>}, {transform_indices = @transform_2, window_bounds = array<i64: 1, 256>}, {transform_indices = @transform_3, window_bounds = array<i64: 16, 256>}]} {
    %c0_i32 = arith.constant 0 : i32
    %0 = arith.cmpi eq, %arg2, %c0_i32 : i32
    %1 = arith.extui %0 : i1 to i32
    %c0_i32_0 = arith.constant 0 : i32
    %2 = arith.cmpi ne, %1, %c0_i32_0 : i32
    scf.if %2 {
      %c0_8 = arith.constant 0 : index
      %c0_9 = arith.constant 0 : index
      %9 = vector.load %arg5[%c0_8, %c0_9] : memref<1x256xf32, #tpu.memory_space<vmem>>, vector<1x256xf32>
      %10 = vector.shape_cast %9 : vector<1x256xf32> to vector<1x256xf32>
      %11 = vector.broadcast %10 : vector<1x256xf32> to vector<16x256xf32>
      %c0_10 = arith.constant 0 : index
      %c0_11 = arith.constant 0 : index
      %12 = vector.load %arg6[%c0_10, %c0_11] : memref<16x256xf32, #tpu.memory_space<vmem>>, vector<16x256xf32>
      tpu.vector_store %arg6[%c0_10, %c0_11], %11 {strides = array<i32>} : memref<16x256xf32, #tpu.memory_space<vmem>>, vector<16x256xf32>,
    } else {
    }
    %c0 = arith.constant 0 : index
    %c0_1 = arith.constant 0 : index
    %3 = vector.load %arg6[%c0, %c0_1] : memref<16x256xf32, #tpu.memory_space<vmem>>, vector<16x256xf32>
    %c0_2 = arith.constant 0 : index
    %c0_3 = arith.constant 0 : index
    %4 = vector.load %arg3[%c0_2, %c0_3] : memref<16x256xbf16, #tpu.memory_space<vmem>>, vector<16x256xbf16>
    %c0_4 = arith.constant 0 : index
    %c0_5 = arith.constant 0 : index
    %5 = vector.load %arg4[%c0_4, %c0_5] : memref<256x256xbf16, #tpu.memory_space<vmem>>, vector<256x256xbf16>
    %cst = arith.constant dense<0.000000e+00> : vector<16x256xf32>
    %6 = tpu.matmul %4, %5, %cst {dimension_numbers = #tpu.dot_dimension_numbers<[1], [0], [0], [1], [0, 0, 1, 1], [], []>} : vector<16x256xbf16>, vector<256x256xbf16>, vector<16x256xf32> -> vector<16x256xf32>
    %7 = arith.addf %3, %6 : vector<16x256xf32>
    %c0_6 = arith.constant 0 : index
    %c0_7 = arith.constant 0 : index
    %8 = vector.load %arg6[%c0_6, %c0_7] : memref<16x256xf32, #tpu.memory_space<vmem>>, vector<16x256xf32>
    tpu.vector_store %arg6[%c0_6, %c0_7], %7 {strides = array<i32>} : memref<16x256xf32, #tpu.memory_space<vmem>>, vector<16x256xf32>,
    return
  }
  func.func @transform_0(%arg0: i32, %arg1: i32, %arg2: i32) -> (i32, i32) {
    %c0_i32 = arith.constant 0 : i32
    return %arg0, %arg2 : i32, i32
  }
  func.func @transform_1(%arg0: i32, %arg1: i32, %arg2: i32) -> (i32, i32) {
    %c0_i32 = arith.constant 0 : i32
    return %arg2, %arg1 : i32, i32
  }
  func.func @transform_2(%arg0: i32, %arg1: i32, %arg2: i32) -> (i32, i32) {
    %c0_i32 = arith.constant 0 : i32
    %c0_i32_0 = arith.constant 0 : i32
    return %c0_i32, %arg1 : i32, i32
  }
  func.func @transform_3(%arg0: i32, %arg1: i32, %arg2: i32) -> (i32, i32) {
    %c0_i32 = arith.constant 0 : i32
    return %arg0, %arg1 : i32, i32
  }
}

</mosaic_0001>

<llo_original>
// kernel: _lambda_.1
$region0: #{_lambda_.1}
  #allocation0 [shape = 'u32[]', space=smem, size = 0x4, offset = 0x4, fixed_abs, tag = 'smem constant byte address 0x4 - core index']
  #allocation1 [shape = 'u32[144,128]{1,0:T(1,128)}', space=vmem, size = 0x12000, scoped, tag = 'internal scratch']
  %s0 = inlined_call_operand.vmem [shape: bf16[16,256], index: 0, kind: input, shape index: {}]
  %s1 = inlined_call_operand.vmem [shape: bf16[256,256], index: 1, kind: input, shape index: {}]
  %s2 = inlined_call_operand.vmem [shape: f32[1,256], index: 2, kind: input, shape index: {}]
  %s3 = inlined_call_operand.hbm [shape: f32[16,256], index: 3, kind: output, shape index: {}]
  %s4 = sld [smem:[#allocation0]]
  $region26: #{_lambda_.1} parent=0
    _
  %s6 = ssub.s32 1, %s4
  %s7 = scalar_select 0, %s6, %s4
  $region1: #{_lambda_.1} parent=0
    #allocation2 [shape = 'u8[16384]{0}', space=vmem, size = 0x4000, scoped, tag = 'output window, operand 0, single buffered']
    #allocation3 [shape = 's32[1]{0}', space=sflag, size = 0x4, scoped, tag = 'scoped memory for _lambda_.1']
    %8 = vsyncpa [#allocation3], 0
    // Predicated region
    $region2: #{_lambda_.1} parent=1 // pred_check
      _
    $region3: #{_lambda_.1} parent=1 // pred_check_branch
      %10 = sbr.rel (0) target = $region5
    $region4: #{_lambda_.1} parent=1 // pred_region
      _
    $region5: #{_lambda_.1} parent=1 // pred_fallthru
      _
    // Predicated region
    $region6: #{_lambda_.1} parent=1 // pred_check
      _
    $region7: #{_lambda_.1} parent=1 // pred_check_branch
      %12 = sbr.rel (0) target = $region9
    $region8: #{_lambda_.1} parent=1 // pred_region
      _
    $region9: #{_lambda_.1} parent=1 // pred_fallthru
      _
    // Predicated region
    $region10: #{_lambda_.1} parent=1 // pred_check
      _
    $region11: #{_lambda_.1} parent=1 // pred_check_branch
      %14 = sbr.rel (0) target = $region13
    $region12: #{_lambda_.1} parent=1 // pred_region
      _
    $region13: #{_lambda_.1} parent=1 // pred_fallthru
      _
    %p15 = scmp.eq.s32.totalorder 0, 0
    // Predicated region
    $region14: #{_lambda_.1} parent=1 // pred_check
      %p16 = pneg %p15
    $region15: #{_lambda_.1} parent=1 // pred_check_branch
      %18 = sbr.rel (%p16) target = $region17
    $region16: #{_lambda_.1} parent=1 // pred_region
      %v19 = vld [vmem:[%s2] sm:$0x3]
      %v21 = vlaneseq
      %v22 = vshrl.u32 %v21, 7
      %v23 = vsub.s32 0, %v22
      %v24 = vrot.slane %v19, %v23
      %v25 = vlaneseq
      %v26 = vshrl.u32 %v25, 7
      %v27 = vsub.s32 1, %v26
      %v28 = vrot.slane %v19, %v27
      %31 = vst [vmem:[#allocation2] sm:$0xff] %v24
      %32 = vst [vmem:[#allocation2 + $0x8] sm:$0xff] %v28
      %33 = vst [vmem:[#allocation2 + $0x10] sm:$0xff] %v24
      %34 = vst [vmem:[#allocation2 + $0x18] sm:$0xff] %v28
    $region17: #{_lambda_.1} parent=1 // pred_fallthru
      _
    %v35 = vld [vmem:[#allocation2] sm:$0xff]
    %v36 = vld [vmem:[#allocation2 + $0x8] sm:$0xff]
    %v37 = vld [vmem:[#allocation2 + $0x10] sm:$0xff]
    %v38 = vld [vmem:[#allocation2 + $0x18] sm:$0xff]
    %v39 = vld [vmem:[%s0] sm:$0xff]
    %v40 = vld [vmem:[%s0 + $0x8] sm:$0xff]
    %v41 = vld [vmem:[%s1] sm:$0xff]
    %v42 = vld [vmem:[%s1 + $0x8] sm:$0xff]
    %v43 = vld [vmem:[%s1 + $0x10] sm:$0xff]
    %v44 = vld [vmem:[%s1 + $0x18] sm:$0xff]
    %v45 = vld [vmem:[%s1 + $0x20] sm:$0xff]
    %v46 = vld [vmem:[%s1 + $0x28] sm:$0xff]
    %v47 = vld [vmem:[%s1 + $0x30] sm:$0xff]
    %v48 = vld [vmem:[%s1 + $0x38] sm:$0xff]
    %v49 = vld [vmem:[%s1 + $0x40] sm:$0xff]
    %v50 = vld [vmem:[%s1 + $0x48] sm:$0xff]
    %v51 = vld [vmem:[%s1 + $0x50] sm:$0xff]
    %v52 = vld [vmem:[%s1 + $0x58] sm:$0xff]
    %v53 = vld [vmem:[%s1 + $0x60] sm:$0xff]
    %v54 = vld [vmem:[%s1 + $0x68] sm:$0xff]
    %v55 = vld [vmem:[%s1 + $0x70] sm:$0xff]
    %v56 = vld [vmem:[%s1 + $0x78] sm:$0xff]
    %v57 = vld [vmem:[%s1 + $0x80] sm:$0xff]
    %v58 = vld [vmem:[%s1 + $0x88] sm:$0xff]
    %v59 = vld [vmem:[%s1 + $0x90] sm:$0xff]
    %v60 = vld [vmem:[%s1 + $0x98] sm:$0xff]
    %v61 = vld [vmem:[%s1 + $0xa0] sm:$0xff]
    %v62 = vld [vmem:[%s1 + $0xa8] sm:$0xff]
    %v63 = vld [vmem:[%s1 + $0xb0] sm:$0xff]
    %v64 = vld [vmem:[%s1 + $0xb8] sm:$0xff]
    %v65 = vld [vmem:[%s1 + $0xc0] sm:$0xff]
    %v66 = vld [vmem:[%s1 + $0xc8] sm:$0xff]
    %v67 = vld [vmem:[%s1 + $0xd0] sm:$0xff]
    %v68 = vld [vmem:[%s1 + $0xd8] sm:$0xff]
    %v69 = vld [vmem:[%s1 + $0xe0] sm:$0xff]
    %v70 = vld [vmem:[%s1 + $0xe8] sm:$0xff]
    %v71 = vld [vmem:[%s1 + $0xf0] sm:$0xff]
    %v72 = vld [vmem:[%s1 + $0xf8] sm:$0xff]
    %v75 = vunpack.c.l.b16 %v39
    %v76 = vunpack.c.h.b16 %v39
    %v77 = vunpack.c.l.b16 %v40
    %v78 = vunpack.c.h.b16 %v40
    %v79 = vpack.c.b16 %v77, %v75
    %v80 = vpack.c.b16 %v78, %v76
    %v115 = vunpack.c.l.b16 %v41
    %v116 = vunpack.c.h.b16 %v41
    %v117 = vunpack.c.l.b16 %v42
    %v118 = vunpack.c.h.b16 %v42
    %v119 = vunpack.c.l.b16 %v43
    %v120 = vunpack.c.h.b16 %v43
    %v121 = vunpack.c.l.b16 %v44
    %v122 = vunpack.c.h.b16 %v44
    %v123 = vunpack.c.l.b16 %v45
    %v124 = vunpack.c.h.b16 %v45
    %v125 = vunpack.c.l.b16 %v46
    %v126 = vunpack.c.h.b16 %v46
    %v127 = vunpack.c.l.b16 %v47
    %v128 = vunpack.c.h.b16 %v47
    %v129 = vunpack.c.l.b16 %v48
    %v130 = vunpack.c.h.b16 %v48
    %v131 = vunpack.c.l.b16 %v49
    %v132 = vunpack.c.h.b16 %v49
    %v133 = vunpack.c.l.b16 %v50
    %v134 = vunpack.c.h.b16 %v50
    %v135 = vunpack.c.l.b16 %v51
    %v136 = vunpack.c.h.b16 %v51
    %v137 = vunpack.c.l.b16 %v52
    %v138 = vunpack.c.h.b16 %v52
    %v139 = vunpack.c.l.b16 %v53
    %v140 = vunpack.c.h.b16 %v53
    %v141 = vunpack.c.l.b16 %v54
    %v142 = vunpack.c.h.b16 %v54
    %v143 = vunpack.c.l.b16 %v55
    %v144 = vunpack.c.h.b16 %v55
    %v145 = vunpack.c.l.b16 %v56
    %v146 = vunpack.c.h.b16 %v56
    %v147 = vunpack.c.l.b16 %v57
    %v148 = vunpack.c.h.b16 %v57
    %v149 = vunpack.c.l.b16 %v58
    %v150 = vunpack.c.h.b16 %v58
    %v151 = vunpack.c.l.b16 %v59
    %v152 = vunpack.c.h.b16 %v59
    %v153 = vunpack.c.l.b16 %v60
    %v154 = vunpack.c.h.b16 %v60
    %v155 = vunpack.c.l.b16 %v61
    %v156 = vunpack.c.h.b16 %v61
    %v157 = vunpack.c.l.b16 %v62
    %v158 = vunpack.c.h.b16 %v62
    %v159 = vunpack.c.l.b16 %v63
    %v160 = vunpack.c.h.b16 %v63
    %v161 = vunpack.c.l.b16 %v64
    %v162 = vunpack.c.h.b16 %v64
    %v163 = vunpack.c.l.b16 %v65
    %v164 = vunpack.c.h.b16 %v65
    %v165 = vunpack.c.l.b16 %v66
    %v166 = vunpack.c.h.b16 %v66
    %v167 = vunpack.c.l.b16 %v67
    %v168 = vunpack.c.h.b16 %v67
    %v169 = vunpack.c.l.b16 %v68
    %v170 = vunpack.c.h.b16 %v68
    %v171 = vunpack.c.l.b16 %v69
    %v172 = vunpack.c.h.b16 %v69
    %v173 = vunpack.c.l.b16 %v70
    %v174 = vunpack.c.h.b16 %v70
    %v175 = vunpack.c.l.b16 %v71
    %v176 = vunpack.c.h.b16 %v71
    %v177 = vunpack.c.l.b16 %v72
    %v178 = vunpack.c.h.b16 %v72
    %v179 = vpack.c.b16 %v117, %v115
    %v180 = vpack.c.b16 %v118, %v116
    %v181 = vpack.c.b16 %v121, %v119
    %v182 = vpack.c.b16 %v122, %v120
    %v183 = vpack.c.b16 %v125, %v123
    %v184 = vpack.c.b16 %v126, %v124
    %v185 = vpack.c.b16 %v129, %v127
    %v186 = vpack.c.b16 %v130, %v128
    %v187 = vpack.c.b16 %v133, %v131
    %v188 = vpack.c.b16 %v134, %v132
    %v189 = vpack.c.b16 %v137, %v135
    %v190 = vpack.c.b16 %v138, %v136
    %v191 = vpack.c.b16 %v141, %v139
    %v192 = vpack.c.b16 %v142, %v140
    %v193 = vpack.c.b16 %v145, %v143
    %v194 = vpack.c.b16 %v146, %v144
    %v195 = vpack.c.b16 %v149, %v147
    %v196 = vpack.c.b16 %v150, %v148
    %v197 = vpack.c.b16 %v153, %v151
    %v198 = vpack.c.b16 %v154, %v152
    %v199 = vpack.c.b16 %v157, %v155
    %v200 = vpack.c.b16 %v158, %v156
    %v201 = vpack.c.b16 %v161, %v159
    %v202 = vpack.c.b16 %v162, %v160
    %v203 = vpack.c.b16 %v165, %v163
    %v204 = vpack.c.b16 %v166, %v164
    %v205 = vpack.c.b16 %v169, %v167
    %v206 = vpack.c.b16 %v170, %v168
    %v207 = vpack.c.b16 %v173, %v171
    %v208 = vpack.c.b16 %v174, %v172
    %v209 = vpack.c.b16 %v177, %v175
    %v210 = vpack.c.b16 %v178, %v176
    %243 = vmatprep.subr.bf16.mxu0 %v194
    %244 = vmatpush1.bf16.msra.mxu0 %v193
    %245 = vmatprep.subr.bf16.mxu0 %v192
    %246 = vmatpush1.bf16.msra.mxu0 %v191
    %247 = vmatprep.subr.bf16.mxu0 %v190
    %248 = vmatpush1.bf16.msra.mxu0 %v189
    %249 = vmatprep.subr.bf16.mxu0 %v188
    %250 = vmatpush1.bf16.msra.mxu0 %v187
    %251 = vmatprep.subr.bf16.mxu0 %v186
    %252 = vmatpush1.bf16.msra.mxu0 %v185
    %253 = vmatprep.subr.bf16.mxu0 %v184
    %254 = vmatpush1.bf16.msra.mxu0 %v183
    %255 = vmatprep.subr.bf16.mxu0 %v182
    %256 = vmatpush1.bf16.msra.mxu0 %v181
    %257 = vmatprep.subr.bf16.mxu0 %v180
    %258 = vmatpush1.bf16.msra.mxu0 %v179
    %259 = vmatprep.subr.bf16.mxu0 %v210
    %260 = vmatpush2.bf16.msra.mxu0 %v209
    %261 = vmatprep.subr.bf16.mxu0 %v208
    %262 = vmatpush2.bf16.msra.mxu0 %v207
    %263 = vmatprep.subr.bf16.mxu0 %v206
    %264 = vmatpush2.bf16.msra.mxu0 %v205
    %265 = vmatprep.subr.bf16.mxu0 %v204
    %266 = vmatpush2.bf16.msra.mxu0 %v203
    %267 = vmatprep.subr.bf16.mxu0 %v202
    %268 = vmatpush2.bf16.msra.mxu0 %v201
    %269 = vmatprep.subr.bf16.mxu0 %v200
    %270 = vmatpush2.bf16.msra.mxu0 %v199
    %271 = vmatprep.subr.bf16.mxu0 %v198
    %272 = vmatpush2.bf16.msra.mxu0 %v197
    %273 = vmatprep.subr.bf16.mxu0 %v196
    %274 = vmatpush2.bf16.msra.mxu0 %v195
    %275 = vmatprep.mubr.bf16.mxu0 %v80
    %276 = vmatmul.mubr.bf16.gmra.mxu0 %v79
    %v277 = vpop.f32.mrf.mxu0
    %v278 = vadd.f32 0.0, %v277
    %v279 = vpop.f32.mrf.mxu0
    %v280 = vadd.f32 0.0, %v279
    %v281 = vpop.f32.mrf.mxu0
    %v282 = vadd.f32 0.0, %v281
    %v283 = vpop.f32.mrf.mxu0
    %v284 = vadd.f32 0.0, %v283
    %285 = vdwg.mxu0
    %v286 = vadd.f32 %v35, %v278
    %v287 = vadd.f32 %v36, %v280
    %v288 = vadd.f32 %v37, %v282
    %v289 = vadd.f32 %v38, %v284
    %290 = vst [vmem:[#allocation2] sm:$0xff] %v286
    %291 = vst [vmem:[#allocation2 + $0x8] sm:$0xff] %v287
    %292 = vst [vmem:[#allocation2 + $0x10] sm:$0xff] %v288
    %293 = vst [vmem:[#allocation2 + $0x18] sm:$0xff] %v289
    // Predicated region
    $region18: #{_lambda_.1} parent=1 // pred_check
      _
    $region19: #{_lambda_.1} parent=1 // pred_check_branch
      %295 = sbr.rel (0) target = $region21
    $region20: #{_lambda_.1} parent=1 // pred_region
      %s297 = ssub.s32 512, 512
      %298 = vsyncadd [#allocation3], %s297
      %s299 = sshll.u32 [#allocation2], 4
      %s300 = int_to_ptr.vmem [resolvable:$true] %s299
      %305 = dma.vmem_to_hbm [thread:$0]  %s300, 512, %s3, [#allocation3], 256, 256, 16
    $region21: #{_lambda_.1} parent=1 // pred_fallthru
      _
    // Predicated region
    $region22: #{_lambda_.1} parent=1 // pred_check
      _
    $region23: #{_lambda_.1} parent=1 // pred_check_branch
      %307 = sbr.rel (0) target = $region25
    $region24: #{_lambda_.1} parent=1 // pred_region
      %308 = dma.done [#allocation3], 512
    $region25: #{_lambda_.1} parent=1 // pred_fallthru
      _
    %309 = vsyncpa [#allocation3], 1

</llo_original>
